<compile_context>
chip_gen: v5e
topology: v5e:2x2
jax: 0.10.0
libtpu: 0.0.40
codegen_flags: <defaults>
</compile_context>

<pallas_src>
import jax
import jax.numpy as jnp
from jax.experimental import pallas as pl
from jax.experimental.pallas import tpu as pltpu


def _hardtanh_kernel(x_ref, o_ref):
    x = x_ref[...]
    # Bounds cast to the input dtype: bf16 / signed-int inputs stay in-dtype
    # on the VPU (no f32 round-trip). -1 and 1 are exact in all supported
    # dtypes; unsigned/bool are filtered out in the wrapper.
    lo = jnp.asarray(-1, x.dtype)
    hi = jnp.asarray(1, x.dtype)
    o_ref[...] = jnp.minimum(jnp.maximum(x, lo), hi)


_TARGET_BLOCK_BYTES = 4 * 1024 * 1024   # ~4 MiB per block (per array)
_VMEM_LIMIT_BYTES = 40 * 1024 * 1024    # explicit scoped-VMEM limit (safe on 64 MiB v7x)
_MIN_KERNEL_BYTES = 256 * 1024          # below this, a fused XLA clamp wins


def _choose_cols(n):
    """Widest lane-dense (128-multiple) column count that divides n exactly."""
    for cols in (4096, 2048, 1024, 512, 256, 128):
        if n % cols == 0:
            return cols
    return None  # ragged -> jnp.clip fallback


def _num_tensorcores():
    """Best-effort TensorCore count (perf heuristic only; defaults to 1)."""
    try:
        info = pltpu.get_tpu_info()
        for attr in ("tensorcore_count", "num_tensorcores", "num_cores", "core_count"):
            v = getattr(info, attr, None)
            if isinstance(v, int) and v > 0:
                return v
    except Exception:
        pass
    try:
        dev = jax.devices()[0]
        for attr in ("num_cores", "core_count"):
            v = getattr(dev, attr, None)
            if isinstance(v, int) and v > 0:
                return v
    except Exception:
        pass
    return 1


def hardtanh(x, *, donate=False, min_kernel_bytes=_MIN_KERNEL_BYTES):
    """torch.clamp(x, -1, 1) via a Pallas TPU elementwise kernel."""
    orig_shape = x.shape
    orig_dtype = x.dtype
    n = x.size
    if n == 0:
        return x

    dt = jnp.dtype(orig_dtype)
    # Unsigned / bool: an in-dtype -1 bound would wrap (e.g. 255 for uint8).
    # Lower bound is a no-op for these, so handle outside the kernel.
    if dt.kind == "b":
        return x
    if dt.kind == "u":
        return jnp.minimum(x, jnp.asarray(1, orig_dtype))

    itemsize = dt.itemsize
    total_bytes = n * itemsize
    cols = _choose_cols(n)

    # Tiny or ragged inputs: the fused XLA clamp is 1 read + 1 write at
    # roofline and avoids pallas_call fixed cost / pad+slice HBM traffic.
    if cols is None or total_bytes < min_kernel_bytes:
        return jnp.clip(x, jnp.asarray(-1, orig_dtype), jnp.asarray(1, orig_dtype))

    sublane = max(8, 32 // itemsize)  # 8 f32, 16 bf16, 32 int8/fp8
    rows = n // cols
    x2d = jnp.ravel(x).reshape(rows, cols)

    # Block rows: target ~4 MiB per block, rounded to the sublane multiple.
    row_bytes = cols * itemsize
    tile_rows = max(sublane, (_TARGET_BLOCK_BYTES // row_bytes) // sublane * sublane)
    if tile_rows >= rows:
        n_cores = _num_tensorcores()
        min_progs = 4 if n_cores >= 2 else 1  # >=2 steps per core for pipelining
        if min_progs > 1 and rows >= min_progs * sublane:
            tile_rows = pl.cdiv(pl.cdiv(rows, min_progs), sublane) * sublane
        else:
            tile_rows = rows  # single full-extent block (always legal)
    grid_rows = pl.cdiv(rows, tile_rows)

    out2d = pl.pallas_call(
        _hardtanh_kernel,
        out_shape=jax.ShapeDtypeStruct((rows, cols), orig_dtype),
        grid=(grid_rows,),
        in_specs=[pl.BlockSpec((tile_rows, cols), lambda i: (i, 0))],
        out_specs=pl.BlockSpec((tile_rows, cols), lambda i: (i, 0)),
        compiler_params=pltpu.CompilerParams(
            dimension_semantics=("parallel",),
            vmem_limit_bytes=_VMEM_LIMIT_BYTES,
        ),
        cost_estimate=pl.CostEstimate(
            flops=2 * n,                       # max + min per element
            transcendentals=0,
            bytes_accessed=2 * total_bytes,    # 1 read + 1 write
        ),
        input_output_aliases=({0: 0} if donate else {}),
    )(x2d)

    return out2d.reshape(orig_shape)


if __name__ == "__main__":
    key = jax.random.PRNGKey(0)
    k0, k1, k2, k3 = jax.random.split(key, 4)

    # Primary test: small NCHW activation tensor; force the Pallas path so the
    # kernel itself is exercised at the module's nominal shape.
    x = jax.random.normal(k0, (2, 4, 16, 16), dtype=jnp.float32) * 3.0
    y = jax.block_until_ready(hardtanh(x, min_kernel_bytes=0))
    assert y.shape == x.shape and y.dtype == x.dtype
    assert jnp.allclose(y, jnp.clip(x, -1.0, 1.0)), "mismatch (f32 NCHW, kernel)"

    # Multi-block / default-threshold path (1 MiB f32 slab).
    xl = jax.random.normal(k1, (256, 1024), dtype=jnp.float32) * 3.0
    yl = jax.block_until_ready(hardtanh(xl))
    assert yl.shape == xl.shape and yl.dtype == xl.dtype
    assert jnp.allclose(yl, jnp.clip(xl, -1.0, 1.0)), "mismatch (f32 large)"

    # bf16 path (dtype-aware sublane + in-dtype clamp bounds), kernel forced.
    xb = (jax.random.normal(k2, (64, 128), dtype=jnp.float32) * 3.0).astype(jnp.bfloat16)
    yb = jax.block_until_ready(hardtanh(xb, min_kernel_bytes=0))
    assert yb.shape == xb.shape and yb.dtype == xb.dtype
    assert jnp.allclose(
        yb.astype(jnp.float32), jnp.clip(xb.astype(jnp.float32), -1.0, 1.0)
    ), "mismatch (bf16)"

    # Ragged size -> fused XLA clamp fallback (no pad/slice HBM passes).
    xr = jax.random.normal(k3, (8, 1000), dtype=jnp.float32) * 3.0
    yr = jax.block_until_ready(hardtanh(xr))
    assert yr.shape == xr.shape and yr.dtype == xr.dtype
    assert jnp.allclose(yr, jnp.clip(xr, -1.0, 1.0)), "mismatch (ragged fallback)"

    print("KERNEL_OK")
</pallas_src>

<mosaic_0001>
module attributes {stable_mosaic.version = 11 : i64} {
  func.func @_hardtanh_kernel(%arg0: i32, %arg1: memref<1x2048xf32, #tpu.memory_space<vmem>>, %arg2: memref<1x2048xf32, #tpu.memory_space<vmem>>) attributes {dimension_semantics = [#tpu.dimension_semantics<parallel>], iteration_bounds = array<i64: 1>, scalar_prefetch = 0 : i64, scratch_operands = 0 : i64, tpu.core_type = #tpu.core_type<tc>, window_params = [{transform_indices = @transform_0, window_bounds = array<i64: 1, 2048>}, {transform_indices = @transform_1, window_bounds = array<i64: 1, 2048>}]} {
    %c0 = arith.constant 0 : index
    %c0_0 = arith.constant 0 : index
    %0 = vector.load %arg1[%c0, %c0_0] : memref<1x2048xf32, #tpu.memory_space<vmem>>, vector<1x2048xf32>
    %cst = arith.constant -1.000000e+00 : f32
    %1 = vector.broadcast %cst : f32 to vector<1x2048xf32>
    %2 = arith.maximumf %0, %1 : vector<1x2048xf32>
    %cst_1 = arith.constant 1.000000e+00 : f32
    %3 = vector.broadcast %cst_1 : f32 to vector<1x2048xf32>
    %4 = arith.minimumf %2, %3 : vector<1x2048xf32>
    %c0_2 = arith.constant 0 : index
    %c0_3 = arith.constant 0 : index
    %5 = vector.load %arg2[%c0_2, %c0_3] : memref<1x2048xf32, #tpu.memory_space<vmem>>, vector<1x2048xf32>
    tpu.vector_store %arg2[%c0_2, %c0_3], %4 {strides = array<i32>} : memref<1x2048xf32, #tpu.memory_space<vmem>>, vector<1x2048xf32>,
    return
  }
  func.func @transform_0(%arg0: i32) -> (i32, i32) {
    %c0_i32 = arith.constant 0 : i32
    %c0_i32_0 = arith.constant 0 : i32
    return %arg0, %c0_i32 : i32, i32
  }
  func.func @transform_1(%arg0: i32) -> (i32, i32) {
    %c0_i32 = arith.constant 0 : i32
    %c0_i32_0 = arith.constant 0 : i32
    return %arg0, %c0_i32 : i32, i32
  }
}

</mosaic_0001>

<llo_original>
// kernel: tpu_custom_call.1
$region0: #{tpu_custom_call.1}
  #allocation0 [shape = 'u32[]', space=smem, size = 0x4, offset = 0x4, fixed_abs, tag = 'smem constant byte address 0x4 - core index']
  #allocation1 [shape = 'u32[72,128]{1,0:T(1,128)}', space=vmem, size = 0x9000, scoped, tag = 'internal scratch']
  %s0 = inlined_call_operand.hbm [shape: f32[1,2048], index: 0, kind: input, shape index: {}]
  %s1 = inlined_call_operand.hbm [shape: f32[1,2048], index: 1, kind: output, shape index: {}]
  %s2 = sld [smem:[#allocation0]]
  $region18: #{tpu_custom_call.1} parent=0
    _
  %s4 = ssub.s32 1, %s2
  %s5 = scalar_select 0, %s4, %s2
  $region1: #{tpu_custom_call.1} parent=0
    #allocation2 [shape = 'u8[8192]{0}', space=vmem, size = 0x2000, scoped, tag = 'input window, operand 0, single buffered']
    #allocation3 [shape = 's32[1]{0}', space=sflag, size = 0x4, scoped, tag = 'scoped memory for tpu_custom_call.1']
    #allocation4 [shape = 's32[1]{0}', space=sflag, size = 0x4, scoped, tag = 'scoped memory for tpu_custom_call.1']
    #allocation5 [shape = 'u8[8192]{0}', space=vmem, size = 0x2000, scoped, tag = 'output window, operand 0, single buffered']
    %6 = vsyncpa [#allocation3], 0
    %7 = vsyncpa [#allocation4], 0
    // Predicated region
    $region2: #{tpu_custom_call.1} parent=1 // pred_check
      _
    $region3: #{tpu_custom_call.1} parent=1 // pred_check_branch
      %9 = sbr.rel (0) target = $region5
    $region4: #{tpu_custom_call.1} parent=1 // pred_region
      %11 = vsyncadd [#allocation3], 0
      %s13 = sshll.u32 %s0, 4
      %s14 = int_to_ptr.hbm [resolvable:$true] %s13
      %s15 = sshll.u32 [#allocation2], 4
      %s16 = int_to_ptr.vmem [resolvable:$true] %s15
      %18 = dma.hbm_to_vmem [thread:$0]  %s14, 256, %s16, [#allocation3]
    $region5: #{tpu_custom_call.1} parent=1 // pred_fallthru
      _
    // Predicated region
    $region6: #{tpu_custom_call.1} parent=1 // pred_check
      _
    $region7: #{tpu_custom_call.1} parent=1 // pred_check_branch
      %20 = sbr.rel (0) target = $region9
    $region8: #{tpu_custom_call.1} parent=1 // pred_region
      %22 = dma.done [#allocation3], 256
    $region9: #{tpu_custom_call.1} parent=1 // pred_fallthru
      _
    %v23 = vld [vmem:[#allocation2] sm:$0xff]
    %v24 = vld [vmem:[#allocation2 + $0x8] sm:$0xff]
    %v25 = vmax.f32 %v23, -1.0
    %v26 = vmax.f32 %v24, -1.0
    %v27 = vmin.f32 %v25, 1.0
    %v28 = vmin.f32 %v26, 1.0
    %29 = vst [vmem:[#allocation5] sm:$0xff] %v27
    %30 = vst [vmem:[#allocation5 + $0x8] sm:$0xff] %v28
    // Predicated region
    $region10: #{tpu_custom_call.1} parent=1 // pred_check
      _
    $region11: #{tpu_custom_call.1} parent=1 // pred_check_branch
      %32 = sbr.rel (0) target = $region13
    $region12: #{tpu_custom_call.1} parent=1 // pred_region
      %34 = vsyncadd [#allocation4], 0
      %s36 = sshll.u32 [#allocation5], 4
      %s37 = int_to_ptr.vmem [resolvable:$true] %s36
      %s38 = sshll.u32 %s1, 4
      %s39 = int_to_ptr.hbm [resolvable:$true] %s38
      %41 = dma.vmem_to_hbm [thread:$0]  %s37, 256, %s39, [#allocation4]
    $region13: #{tpu_custom_call.1} parent=1 // pred_fallthru
      _
    // Predicated region
    $region14: #{tpu_custom_call.1} parent=1 // pred_check
      _
    $region15: #{tpu_custom_call.1} parent=1 // pred_check_branch
      %43 = sbr.rel (0) target = $region17
    $region16: #{tpu_custom_call.1} parent=1 // pred_region
      %45 = dma.done [#allocation4], 256
    $region17: #{tpu_custom_call.1} parent=1 // pred_fallthru
      _
    %46 = vsyncpa [#allocation3], 1
    %47 = vsyncpa [#allocation4], 1

</llo_original>
